<compile_context>
chip_gen: v7x
topology: tpu7x:2x2x1
jax: 0.10.0
libtpu: 0.0.40
codegen_flags: <defaults>
</compile_context>

<pallas_src>
import functools

import jax
import jax.numpy as jnp
from jax.experimental import pallas as pl
from jax.experimental.pallas import tpu as pltpu

LANES = 128
_MAX_WIDTH = 8 * 1024          # max last-dim width (elements); multiple of 128
_TARGET_TILE_BYTES = 2 << 20   # ~2 MiB per block (×4 when in/out double-buffered)
_VMEM_LIMIT_BYTES = 32 << 20   # explicit scoped-VMEM cap; ample headroom on v7x


def _smooth_leaky_relu_kernel(x_ref, o_ref, *, alpha):
    c1 = (1.0 + alpha) * 0.5
    c2 = (1.0 - alpha) * 0.5
    x = x_ref[...].astype(jnp.float32)
    o_ref[...] = (x * (c1 + c2 * jnp.tanh(0.5 * x))).astype(o_ref.dtype)


def _sublane_multiple(dtype):
    # f32 -> 8, bf16 -> 16, int8/fp8 -> 32 (packed sublane requirement).
    itemsize = jnp.dtype(dtype).itemsize
    return max(8, 8 * (4 // max(itemsize, 1)))


def _choose_width(n_padded, max_width):
    # Largest multiple of LANES that divides n_padded and is <= max_width.
    m = n_padded // LANES
    cap = max(1, max_width // LANES)
    for d in range(min(m, cap), 0, -1):
        if m % d == 0:
            return d * LANES
    return LANES


def smooth_leaky_relu(x, negative_slope=0.2):
    """Elementwise SmoothLeakyReLU via a Pallas TPU kernel (any shape/dtype)."""
    orig_shape = x.shape
    orig_dtype = x.dtype
    n = x.size
    if n == 0:
        return x

    flat = x.reshape(-1)

    # Minimal padding: only up to the 128-lane width (skipped when aligned).
    n_padded = pl.cdiv(n, LANES) * LANES
    needs_pad = n_padded != n
    if needs_pad:
        flat = jnp.pad(flat, (0, n_padded - n))

    # Wide, lane-dense slab.
    w = _choose_width(n_padded, _MAX_WIDTH)
    rows = n_padded // w
    x2d = flat.reshape(rows, w)

    # ~2 MiB blocks over rows; sublane-aligned unless one block covers all rows.
    itemsize = jnp.dtype(orig_dtype).itemsize
    sub = _sublane_multiple(orig_dtype)
    block_rows = max(sub, (_TARGET_TILE_BYTES // (w * itemsize)) // sub * sub)
    if block_rows >= rows:
        block_rows = rows  # single full block; full-extent dims need no alignment
    grid = pl.cdiv(rows, block_rows)  # ragged trailing block is masked by Pallas

    kernel = functools.partial(_smooth_leaky_relu_kernel,
                               alpha=float(negative_slope))

    out2d = pl.pallas_call(
        kernel,
        out_shape=jax.ShapeDtypeStruct((rows, w), orig_dtype),
        grid=(grid,),
        in_specs=[pl.BlockSpec((block_rows, w), lambda i: (i, 0))],
        out_specs=pl.BlockSpec((block_rows, w), lambda i: (i, 0)),
        compiler_params=pltpu.CompilerParams(
            dimension_semantics=("parallel",),
            vmem_limit_bytes=_VMEM_LIMIT_BYTES,
        ),
    )(x2d)

    if needs_pad:
        return out2d.reshape(-1)[:n].reshape(orig_shape)
    return out2d.reshape(orig_shape)


def smooth_leaky_relu_ref(x, negative_slope=0.2):
    a = negative_slope
    xf = x.astype(jnp.float32)
    return ((1 + a) / 2 * xf
            + (1 - a) / 2 * xf * (2 * jax.nn.sigmoid(xf) - 1)).astype(x.dtype)


if __name__ == "__main__":
    key = jax.random.PRNGKey(0)

    # NCHW, like the PyTorch module's typical input (aligned, no-pad path).
    x = jax.random.normal(key, (2, 4, 16, 16), dtype=jnp.float32)
    y = jax.block_until_ready(smooth_leaky_relu(x, negative_slope=0.2))
    y_ref = smooth_leaky_relu_ref(x, negative_slope=0.2)
    assert y.shape == x.shape and y.dtype == x.dtype
    assert jnp.allclose(y, y_ref, atol=1e-5, rtol=1e-5), "mismatch vs reference"

    # Odd-sized input exercising the padded / ragged path.
    x2 = jax.random.normal(jax.random.PRNGKey(1), (3, 5, 7, 11), dtype=jnp.float32)
    y2 = jax.block_until_ready(smooth_leaky_relu(x2, negative_slope=0.2))
    y2_ref = smooth_leaky_relu_ref(x2, negative_slope=0.2)
    assert y2.shape == x2.shape and y2.dtype == x2.dtype
    assert jnp.allclose(y2, y2_ref, atol=1e-5, rtol=1e-5), "mismatch vs reference"

    print("KERNEL_OK")
</pallas_src>

<mosaic_0001>
module attributes {stable_mosaic.version = 11 : i64} {
  func.func @_smooth_leaky_relu_kernel(%arg0: i32, %arg1: memref<1x2048xf32, #tpu.memory_space<vmem>>, %arg2: memref<1x2048xf32, #tpu.memory_space<vmem>>) attributes {dimension_semantics = [#tpu.dimension_semantics<parallel>], iteration_bounds = array<i64: 1>, scalar_prefetch = 0 : i64, scratch_operands = 0 : i64, tpu.core_type = #tpu.core_type<tc>, window_params = [{transform_indices = @transform_0, window_bounds = array<i64: 1, 2048>}, {transform_indices = @transform_1, window_bounds = array<i64: 1, 2048>}]} {
    %c0 = arith.constant 0 : index
    %c0_0 = arith.constant 0 : index
    %0 = vector.load %arg1[%c0, %c0_0] : memref<1x2048xf32, #tpu.memory_space<vmem>>, vector<1x2048xf32>
    %cst = arith.constant 5.000000e-01 : f32
    %1 = vector.broadcast %cst : f32 to vector<1x2048xf32>
    %2 = arith.mulf %1, %0 : vector<1x2048xf32>
    %3 = math.tanh %2 : vector<1x2048xf32>
    %cst_1 = arith.constant 4.000000e-01 : f32
    %4 = vector.broadcast %cst_1 : f32 to vector<1x2048xf32>
    %5 = arith.mulf %4, %3 : vector<1x2048xf32>
    %cst_2 = arith.constant 6.000000e-01 : f32
    %6 = vector.broadcast %cst_2 : f32 to vector<1x2048xf32>
    %7 = arith.addf %6, %5 : vector<1x2048xf32>
    %8 = arith.mulf %0, %7 : vector<1x2048xf32>
    %c0_3 = arith.constant 0 : index
    %c0_4 = arith.constant 0 : index
    %9 = vector.load %arg2[%c0_3, %c0_4] : memref<1x2048xf32, #tpu.memory_space<vmem>>, vector<1x2048xf32>
    tpu.vector_store %arg2[%c0_3, %c0_4], %8 {strides = array<i32>} : memref<1x2048xf32, #tpu.memory_space<vmem>>, vector<1x2048xf32>,
    return
  }
  func.func @transform_0(%arg0: i32) -> (i32, i32) {
    %c0_i32 = arith.constant 0 : i32
    %c0_i32_0 = arith.constant 0 : i32
    return %arg0, %c0_i32 : i32, i32
  }
  func.func @transform_1(%arg0: i32) -> (i32, i32) {
    %c0_i32 = arith.constant 0 : i32
    %c0_i32_0 = arith.constant 0 : i32
    return %arg0, %c0_i32 : i32, i32
  }
}

</mosaic_0001>

<llo_original>
// kernel: tpu_custom_call.1
$region0: #{tpu_custom_call.1}
  #allocation0 [shape = 'u32[]', space=smem, size = 0x4, offset = 0x4, fixed_abs, tag = 'smem constant byte address 0x4 - core index']
  #allocation1 [shape = 'u32[144,128]{1,0:T(1,128)}', space=vmem, size = 0x12000, scoped, tag = 'internal scratch']
  %s0 = inlined_call_operand.hbm [shape: f32[1,2048], index: 0, kind: input, shape index: {}]
  %s1 = inlined_call_operand.hbm [shape: f32[1,2048], index: 1, kind: output, shape index: {}]
  %s2 = sld [smem:[#allocation0]]
  $region18: #{tpu_custom_call.1} parent=0
    _
  %s4 = ssub.s32 1, %s2
  %s5 = scalar_select 0, %s4, %s2
  $region1: #{tpu_custom_call.1} parent=0
    #allocation2 [shape = 'u8[8192]{0}', space=vmem, size = 0x2000, scoped, tag = 'input window, operand 0, single buffered']
    #allocation3 [shape = 's32[1]{0}', space=sflag, size = 0x4, scoped, tag = 'scoped memory for tpu_custom_call.1']
    #allocation4 [shape = 's32[1]{0}', space=sflag, size = 0x4, scoped, tag = 'scoped memory for tpu_custom_call.1']
    #allocation5 [shape = 'u8[8192]{0}', space=vmem, size = 0x2000, scoped, tag = 'output window, operand 0, single buffered']
    %6 = vsyncpa [#allocation3], 0
    %7 = vsyncpa [#allocation4], 0
    // Predicated region
    $region2: #{tpu_custom_call.1} parent=1 // pred_check
      _
    $region3: #{tpu_custom_call.1} parent=1 // pred_check_branch
      %9 = sbr.rel (0) target = $region5
    $region4: #{tpu_custom_call.1} parent=1 // pred_region
      %s11 = ssub.s32 256, 256
      %12 = vsyncadd [#allocation3], %s11
      %s14 = sshll.u32 [#allocation2], 4
      %s15 = int_to_ptr.vmem [resolvable:$true] %s14
      %17 = dma.hbm_to_vmem [thread:$0]  %s0, 256, %s15, [#allocation3]
    $region5: #{tpu_custom_call.1} parent=1 // pred_fallthru
      _
    // Predicated region
    $region6: #{tpu_custom_call.1} parent=1 // pred_check
      _
    $region7: #{tpu_custom_call.1} parent=1 // pred_check_branch
      %19 = sbr.rel (0) target = $region9
    $region8: #{tpu_custom_call.1} parent=1 // pred_region
      %20 = dma.done [#allocation3], 256
    $region9: #{tpu_custom_call.1} parent=1 // pred_fallthru
      _
    %v21 = vld [vmem:[#allocation2] sm:$0xff]
    %v22 = vld [vmem:[#allocation2 + $0x8] sm:$0xff]
    %v23 = vmul.f32 %v21, 0.5
    %v24 = vmul.f32 %v22, 0.5
    %v25 = vtanh.pop %v23
    %v26 = vtanh.pop %v24
    %v27 = vmul.f32 %v25, 0.4
    %v28 = vmul.f32 %v26, 0.4
    %v29 = vadd.f32 %v27, 0.6
    %v30 = vadd.f32 %v28, 0.6
    %v31 = vmul.f32 %v21, %v29
    %v32 = vmul.f32 %v22, %v30
    %33 = vst [vmem:[#allocation5] sm:$0xff] %v31
    %34 = vst [vmem:[#allocation5 + $0x8] sm:$0xff] %v32
    // Predicated region
    $region10: #{tpu_custom_call.1} parent=1 // pred_check
      _
    $region11: #{tpu_custom_call.1} parent=1 // pred_check_branch
      %36 = sbr.rel (0) target = $region13
    $region12: #{tpu_custom_call.1} parent=1 // pred_region
      %s38 = ssub.s32 256, 256
      %39 = vsyncadd [#allocation4], %s38
      %s41 = sshll.u32 [#allocation5], 4
      %s42 = int_to_ptr.vmem [resolvable:$true] %s41
      %44 = dma.vmem_to_hbm [thread:$0]  %s42, 256, %s1, [#allocation4]
    $region13: #{tpu_custom_call.1} parent=1 // pred_fallthru
      _
    // Predicated region
    $region14: #{tpu_custom_call.1} parent=1 // pred_check
      _
    $region15: #{tpu_custom_call.1} parent=1 // pred_check_branch
      %46 = sbr.rel (0) target = $region17
    $region16: #{tpu_custom_call.1} parent=1 // pred_region
      %47 = dma.done [#allocation4], 256
    $region17: #{tpu_custom_call.1} parent=1 // pred_fallthru
      _
    %48 = vsyncpa [#allocation3], 1
    %49 = vsyncpa [#allocation4], 1

</llo_original>
